<compile_context>
chip_gen: v6e
topology: v6e:2x2x1
jax: 0.10.0
libtpu: 0.0.40
codegen_flags: <defaults>
</compile_context>

<pallas_src>
import functools

import jax
import jax.numpy as jnp
from jax import lax
from jax.experimental import pallas as pl
from jax.experimental.pallas import tpu as pltpu

KERNEL_SIZE = 3
STRIDE = 2
PAD = 1


def _downsample1d_kernel(e_ref, o_ref, w_ref, b_ref, out_ref):
    # e_ref   : (1, L_out+1, C_in)  even rows of the padded input (taps 0 and 2)
    # o_ref   : (1, L_out,   C_in)  odd rows of the padded input  (tap 1)
    # w_ref   : (3, C_in, C_out)    pre-transposed conv weight (tap, in, out)
    # b_ref   : (1, C_out)
    # out_ref : (1, L_out, C_out)
    l_out = out_ref.shape[1]
    # tap 0: even rows [0 .. L_out-1]
    acc = jnp.dot(e_ref[0, :l_out, :], w_ref[0],
                  preferred_element_type=jnp.float32)
    # tap 1: odd rows [0 .. L_out-1]
    acc = acc + jnp.dot(o_ref[0], w_ref[1],
                        preferred_element_type=jnp.float32)
    # tap 2: even rows [1 .. L_out]  (sublane-offset load, no extra HBM copy)
    acc = acc + jnp.dot(e_ref[0, 1:l_out + 1, :], w_ref[2],
                        preferred_element_type=jnp.float32)
    out_ref[0] = (acc + b_ref[...]).astype(out_ref.dtype)


def prepare_conv_params(weight, bias):
    """One-time parameter prep (no per-call transpose in the forward path).

    weight: (C_out, C_in, 3) PyTorch Conv1d layout; bias: (C_out,).
    Returns w_taps: (3, C_in, C_out), bias2d: (1, C_out).
    """
    w_taps = jnp.transpose(weight, (2, 1, 0))
    bias2d = bias.reshape(1, -1)
    return w_taps, bias2d


@functools.partial(jax.jit, static_argnames=())
def downsample1d_forward(x, w_taps, bias2d):
    """x: (bs, dim, L) float32 (PyTorch NCL layout). Returns (bs, dim, L_out)."""
    bs, c_in, length = x.shape
    k, c_in_w, c_out = w_taps.shape
    assert k == KERNEL_SIZE and c_in_w == c_in
    l_out = (length + 2 * PAD - KERNEL_SIZE) // STRIDE + 1

    # XLA-side layout plumbing (fused under jit): channels-last, zero pad,
    # even/odd row split.  Even+odd together hold each padded row exactly once,
    # so the kernel's activation read is ~1x the input size.
    x_cl = jnp.transpose(x, (0, 2, 1))                       # (bs, L, C)
    x_pad = jnp.pad(x_cl, ((0, 0), (PAD, PAD), (0, 0)))      # (bs, L+2, C)
    x_even = x_pad[:, 0:2 * (l_out + 1):2, :]                # (bs, L_out+1, C)
    x_odd = x_pad[:, 1:1 + 2 * l_out:2, :]                   # (bs, L_out,   C)

    flops = 2 * bs * l_out * c_in * c_out * KERNEL_SIZE
    bytes_accessed = 4 * (bs * (l_out + 1) * c_in            # even rows
                          + bs * l_out * c_in                # odd rows
                          + KERNEL_SIZE * c_in * c_out + c_out   # params
                          + bs * l_out * c_out)              # output

    out_cl = pl.pallas_call(
        _downsample1d_kernel,
        out_shape=jax.ShapeDtypeStruct((bs, l_out, c_out), x.dtype),
        grid=(bs,),
        in_specs=[
            pl.BlockSpec((1, l_out + 1, c_in), lambda b: (b, 0, 0)),
            pl.BlockSpec((1, l_out, c_in), lambda b: (b, 0, 0)),
            pl.BlockSpec((KERNEL_SIZE, c_in, c_out), lambda b: (0, 0, 0)),
            pl.BlockSpec((1, c_out), lambda b: (0, 0)),
        ],
        out_specs=pl.BlockSpec((1, l_out, c_out), lambda b: (b, 0, 0)),
        compiler_params=pltpu.CompilerParams(
            dimension_semantics=("parallel",),
        ),
        cost_estimate=pl.CostEstimate(
            flops=flops, transcendentals=0, bytes_accessed=bytes_accessed),
    )(x_even, x_odd, w_taps, bias2d)

    return jnp.transpose(out_cl, (0, 2, 1))                  # (bs, C_out, L_out)


def _init_params(key, dim):
    # Mimic nn.Conv1d default init: U(-sqrt(k), sqrt(k)), k = 1/(C_in * kernel).
    k_w, k_b = jax.random.split(key)
    bound = 1.0 / ((dim * KERNEL_SIZE) ** 0.5)
    weight = jax.random.uniform(k_w, (dim, dim, KERNEL_SIZE), jnp.float32, -bound, bound)
    bias = jax.random.uniform(k_b, (dim,), jnp.float32, -bound, bound)
    return weight, bias


if __name__ == "__main__":
    key = jax.random.PRNGKey(0)
    k_x, k_p = jax.random.split(key)

    bs, dim, length = 2, 8, 16        # small shapes; L_out = 8
    linear_dim = 32                   # present in the module ctor but unused by forward
    weight, bias = _init_params(k_p, dim)
    w_taps, bias2d = prepare_conv_params(weight, bias)      # one-time prep

    # Check both an even and an odd sequence length (edge handling of the pad).
    for L in (length, length - 1):
        x = jax.random.normal(jax.random.fold_in(k_x, L), (bs, dim, L), jnp.float32)
        out = jax.block_until_ready(downsample1d_forward(x, w_taps, bias2d))

        # Reference: plain XLA conv with PyTorch Conv1d(dim, dim, 3, 2, 1) semantics.
        ref = lax.conv_general_dilated(
            x, weight, window_strides=(STRIDE,), padding=((PAD, PAD),),
            dimension_numbers=("NCH", "OIH", "NCH"))
        ref = ref + bias[None, :, None]

        l_out = (L + 2 * PAD - KERNEL_SIZE) // STRIDE + 1
        assert out.shape == (bs, dim, l_out), out.shape
        # Tolerance covers MXU default-precision matmul vs XLA conv paths.
        err = float(jnp.max(jnp.abs(out - ref)))
        assert jnp.allclose(out, ref, atol=2e-2, rtol=2e-2), err

    print("KERNEL_OK")
</pallas_src>

<mosaic_0001>
module attributes {stable_mosaic.version = 11 : i64} {
  func.func @_downsample1d_kernel(%arg0: i32, %arg1: memref<1x9x8xf32, #tpu.memory_space<vmem>>, %arg2: memref<1x8x8xf32, #tpu.memory_space<vmem>>, %arg3: memref<3x8x8xf32, #tpu.memory_space<vmem>>, %arg4: memref<1x8xf32, #tpu.memory_space<vmem>>, %arg5: memref<1x8x8xf32, #tpu.memory_space<vmem>>) attributes {dimension_semantics = [#tpu.dimension_semantics<parallel>], iteration_bounds = array<i64: 2>, scalar_prefetch = 0 : i64, scratch_operands = 0 : i64, tpu.core_type = #tpu.core_type<tc>, window_params = [{transform_indices = @transform_0, window_bounds = array<i64: 1, 9, 8>}, {transform_indices = @transform_1, window_bounds = array<i64: 1, 8, 8>}, {pipeline_mode = #tpu.pipeline_mode<synchronous>, transform_indices = @transform_2, window_bounds = array<i64: 3, 8, 8>}, {pipeline_mode = #tpu.pipeline_mode<synchronous>, transform_indices = @transform_3, window_bounds = array<i64: 1, 8>}, {transform_indices = @transform_4, window_bounds = array<i64: 1, 8, 8>}]} {
    %c0 = arith.constant 0 : index
    %c0_0 = arith.constant 0 : index
    %c0_1 = arith.constant 0 : index
    %0 = vector.load %arg1[%c0, %c0_0, %c0_1] : memref<1x9x8xf32, #tpu.memory_space<vmem>>, vector<1x8x8xf32>
    %1 = vector.shape_cast %0 : vector<1x8x8xf32> to vector<8x8xf32>
    %c0_2 = arith.constant 0 : index
    %c0_3 = arith.constant 0 : index
    %c0_4 = arith.constant 0 : index
    %2 = vector.load %arg3[%c0_2, %c0_3, %c0_4] : memref<3x8x8xf32, #tpu.memory_space<vmem>>, vector<1x8x8xf32>
    %3 = vector.shape_cast %2 : vector<1x8x8xf32> to vector<8x8xf32>
    %cst = arith.constant dense<0.000000e+00> : vector<8x8xf32>
    %4 = tpu.matmul %1, %3, %cst {dimension_numbers = #tpu.dot_dimension_numbers<[1], [0], [0], [1], [0, 0, 1, 1], [], []>} : vector<8x8xf32>, vector<8x8xf32>, vector<8x8xf32> -> vector<8x8xf32>
    %c0_5 = arith.constant 0 : index
    %c0_6 = arith.constant 0 : index
    %c0_7 = arith.constant 0 : index
    %5 = vector.load %arg2[%c0_5, %c0_6, %c0_7] : memref<1x8x8xf32, #tpu.memory_space<vmem>>, vector<1x8x8xf32>
    %6 = vector.shape_cast %5 : vector<1x8x8xf32> to vector<8x8xf32>
    %c1 = arith.constant 1 : index
    %c0_8 = arith.constant 0 : index
    %c0_9 = arith.constant 0 : index
    %7 = vector.load %arg3[%c1, %c0_8, %c0_9] : memref<3x8x8xf32, #tpu.memory_space<vmem>>, vector<1x8x8xf32>
    %8 = vector.shape_cast %7 : vector<1x8x8xf32> to vector<8x8xf32>
    %cst_10 = arith.constant dense<0.000000e+00> : vector<8x8xf32>
    %9 = tpu.matmul %6, %8, %cst_10 {dimension_numbers = #tpu.dot_dimension_numbers<[1], [0], [0], [1], [0, 0, 1, 1], [], []>} : vector<8x8xf32>, vector<8x8xf32>, vector<8x8xf32> -> vector<8x8xf32>
    %10 = arith.addf %4, %9 : vector<8x8xf32>
    %c0_11 = arith.constant 0 : index
    %c1_12 = arith.constant 1 : index
    %c0_13 = arith.constant 0 : index
    %11 = vector.load %arg1[%c0_11, %c1_12, %c0_13] : memref<1x9x8xf32, #tpu.memory_space<vmem>>, vector<1x8x8xf32>
    %12 = vector.shape_cast %11 : vector<1x8x8xf32> to vector<8x8xf32>
    %c2 = arith.constant 2 : index
    %c0_14 = arith.constant 0 : index
    %c0_15 = arith.constant 0 : index
    %13 = vector.load %arg3[%c2, %c0_14, %c0_15] : memref<3x8x8xf32, #tpu.memory_space<vmem>>, vector<1x8x8xf32>
    %14 = vector.shape_cast %13 : vector<1x8x8xf32> to vector<8x8xf32>
    %cst_16 = arith.constant dense<0.000000e+00> : vector<8x8xf32>
    %15 = tpu.matmul %12, %14, %cst_16 {dimension_numbers = #tpu.dot_dimension_numbers<[1], [0], [0], [1], [0, 0, 1, 1], [], []>} : vector<8x8xf32>, vector<8x8xf32>, vector<8x8xf32> -> vector<8x8xf32>
    %16 = arith.addf %10, %15 : vector<8x8xf32>
    %c0_17 = arith.constant 0 : index
    %c0_18 = arith.constant 0 : index
    %17 = vector.load %arg4[%c0_17, %c0_18] : memref<1x8xf32, #tpu.memory_space<vmem>>, vector<1x8xf32>
    %18 = vector.broadcast %17 : vector<1x8xf32> to vector<8x8xf32>
    %19 = arith.addf %16, %18 : vector<8x8xf32>
    %c0_19 = arith.constant 0 : index
    %c0_20 = arith.constant 0 : index
    %c0_21 = arith.constant 0 : index
    %20 = vector.load %arg5[%c0_19, %c0_20, %c0_21] : memref<1x8x8xf32, #tpu.memory_space<vmem>>, vector<1x8x8xf32>
    %21 = vector.shape_cast %20 : vector<1x8x8xf32> to vector<8x8xf32>
    %22 = vector.shape_cast %19 : vector<8x8xf32> to vector<1x8x8xf32>
    tpu.vector_store %arg5[%c0_19, %c0_20, %c0_21], %22 {strides = array<i32>} : memref<1x8x8xf32, #tpu.memory_space<vmem>>, vector<1x8x8xf32>,
    return
  }
  func.func @transform_0(%arg0: i32) -> (i32, i32, i32) {
    %c0_i32 = arith.constant 0 : i32
    %c0_i32_0 = arith.constant 0 : i32
    %c0_i32_1 = arith.constant 0 : i32
    return %arg0, %c0_i32, %c0_i32_0 : i32, i32, i32
  }
  func.func @transform_1(%arg0: i32) -> (i32, i32, i32) {
    %c0_i32 = arith.constant 0 : i32
    %c0_i32_0 = arith.constant 0 : i32
    %c0_i32_1 = arith.constant 0 : i32
    return %arg0, %c0_i32, %c0_i32_0 : i32, i32, i32
  }
  func.func @transform_2(%arg0: i32) -> (i32, i32, i32) {
    %c0_i32 = arith.constant 0 : i32
    %c0_i32_0 = arith.constant 0 : i32
    %c0_i32_1 = arith.constant 0 : i32
    %c0_i32_2 = arith.constant 0 : i32
    return %c0_i32, %c0_i32_0, %c0_i32_1 : i32, i32, i32
  }
  func.func @transform_3(%arg0: i32) -> (i32, i32) {
    %c0_i32 = arith.constant 0 : i32
    %c0_i32_0 = arith.constant 0 : i32
    %c0_i32_1 = arith.constant 0 : i32
    return %c0_i32, %c0_i32_0 : i32, i32
  }
  func.func @transform_4(%arg0: i32) -> (i32, i32, i32) {
    %c0_i32 = arith.constant 0 : i32
    %c0_i32_0 = arith.constant 0 : i32
    %c0_i32_1 = arith.constant 0 : i32
    return %arg0, %c0_i32, %c0_i32_0 : i32, i32, i32
  }
}

</mosaic_0001>

<llo_original>
// kernel: downsample1d_forward.1
$region0: #{downsample1d_forward.1}
  #allocation0 [shape = 'u32[]', space=smem, size = 0x4, offset = 0x4, fixed_abs, tag = 'smem constant byte address 0x4 - core index']
  #allocation1 [shape = 'u32[144,128]{1,0:T(1,128)}', space=vmem, size = 0x12000, scoped, tag = 'internal scratch']
  %s0 = inlined_call_operand.vmem [shape: f32[2,9,8], index: 0, kind: input, shape index: {}]
  %s1 = inlined_call_operand.vmem [shape: f32[2,8,8], index: 1, kind: input, shape index: {}]
  %s2 = inlined_call_operand.vmem [shape: f32[3,8,8], index: 2, kind: input, shape index: {}]
  %s3 = inlined_call_operand.vmem [shape: f32[1,8], index: 3, kind: input, shape index: {}]
  %s4 = inlined_call_operand.vmem [shape: f32[2,8,8], index: 4, kind: output, shape index: {}]
  %s5 = sld [smem:[#allocation0]]
  $region49: #{downsample1d_forward.1} parent=0
    _
  %s7 = ssub.s32 1, %s5
  %s8 = scalar_select 0, %s7, %s5
  loop: start=0, step=1, limit=4
  $region2: #{downsample1d_forward.1} parent=0 // loop_pre_header
    _
  $region3: #{downsample1d_forward.1} parent=0 // loop_header
    %s10 = sphi 0, %s14
    %p11 = scmp.ge.s32.totalorder %s10, 4
    %s20 = sphi 0, %s22
    %s23 = sphi 0, %s20
    %s24 = sphi 0, %s23
    %s40 = sphi 0, %s24
    %s46 = sphi 0, %s48
    %s49 = sphi 0, %s46
    %s50 = sphi 0, %s49
    %s66 = sphi 0, %s50
    %s70 = sphi 0, %s70
    %s72 = sphi 0, %s70
    %s73 = sphi 0, %s72
    %s87 = sphi 0, %s73
    %s91 = sphi 0, %s91
    %s93 = sphi 0, %s91
    %s94 = sphi 0, %s93
    %s108 = sphi 0, %s94
    %s114 = sphi 0, %s116
    %s117 = sphi 0, %s114
    %s118 = sphi 0, %s117
    %s134 = sphi 0, %s118
  $region4: #{downsample1d_forward.1} parent=0 // loop_header_branch
    %13 = sbr.rel (%p11) target = $region8
  $region5: #{downsample1d_forward.1} parent=0 // loop_body
    %s15 = ssub.s32 %s10, 1
    %s16 = ssub.s32 %s10, 2
    %s17 = sadd.s32 %s10, 1
    %s18 = ssub.s32 %s10, %s17
    %p19 = scmp.eq.s32.totalorder %s18, 0
    %s21 = sadd.s32 %s20, 1
    %s22 = scalar_select %p19, %s20, %s21
    %p25 = pneg %p19
    %p26 = scmp.eq.s32.totalorder %s10, 1
    %p27 = por %p25, %p26
    %p28 = scmp.ne.s32.totalorder %s20, %s23
    %p29 = scmp.eq.s32.totalorder %s10, 0
    %p30 = por %p28, %p29
    %p31 = scmp.ne.s32.totalorder %s20, %s23
    %p32 = scmp.eq.s32.totalorder %s15, 1
    %p33 = por %p31, %p32
    %p34 = scmp.ne.s32.totalorder %s23, %s24
    %p35 = scmp.eq.s32.totalorder %s15, 0
    %p36 = por %p34, %p35
    %p37 = scmp.ne.s32.totalorder %s23, %s24
    %p38 = scmp.eq.s32.totalorder %s16, 1
    %p39 = por %p37, %p38
    %p41 = scmp.ne.s32.totalorder %s24, %s40
    %p42 = scmp.eq.s32.totalorder %s16, 0
    %p43 = por %p41, %p42
    %s44 = ssub.s32 %s10, %s17
    %p45 = scmp.eq.s32.totalorder %s44, 0
    %s47 = sadd.s32 %s46, 1
    %s48 = scalar_select %p45, %s46, %s47
    %p51 = pneg %p45
    %p52 = scmp.eq.s32.totalorder %s10, 1
    %p53 = por %p51, %p52
    %p54 = scmp.ne.s32.totalorder %s46, %s49
    %p55 = scmp.eq.s32.totalorder %s10, 0
    %p56 = por %p54, %p55
    %p57 = scmp.ne.s32.totalorder %s46, %s49
    %p58 = scmp.eq.s32.totalorder %s15, 1
    %p59 = por %p57, %p58
    %p60 = scmp.ne.s32.totalorder %s49, %s50
    %p61 = scmp.eq.s32.totalorder %s15, 0
    %p62 = por %p60, %p61
    %p63 = scmp.ne.s32.totalorder %s49, %s50
    %p64 = scmp.eq.s32.totalorder %s16, 1
    %p65 = por %p63, %p64
    %p67 = scmp.ne.s32.totalorder %s50, %s66
    %p68 = scmp.eq.s32.totalorder %s16, 0
    %p69 = por %p67, %p68
    %s71 = sadd.s32 %s70, 1
    %p74 = scmp.eq.s32.totalorder %s10, 1
    %p75 = scmp.ne.s32.totalorder %s70, %s72
    %p76 = scmp.eq.s32.totalorder %s10, 0
    %p77 = por %p75, %p76
    %p78 = scmp.ne.s32.totalorder %s70, %s72
    %p79 = scmp.eq.s32.totalorder %s15, 1
    %p80 = por %p78, %p79
    %p81 = scmp.ne.s32.totalorder %s72, %s73
    %p82 = scmp.eq.s32.totalorder %s15, 0
    %p83 = por %p81, %p82
    %p84 = scmp.ne.s32.totalorder %s72, %s73
    %p85 = scmp.eq.s32.totalorder %s16, 1
    %p86 = por %p84, %p85
    %p88 = scmp.ne.s32.totalorder %s73, %s87
    %p89 = scmp.eq.s32.totalorder %s16, 0
    %p90 = por %p88, %p89
    %s92 = sadd.s32 %s91, 1
    %p95 = scmp.eq.s32.totalorder %s10, 1
    %p96 = scmp.ne.s32.totalorder %s91, %s93
    %p97 = scmp.eq.s32.totalorder %s10, 0
    %p98 = por %p96, %p97
    %p99 = scmp.ne.s32.totalorder %s91, %s93
    %p100 = scmp.eq.s32.totalorder %s15, 1
    %p101 = por %p99, %p100
    %p102 = scmp.ne.s32.totalorder %s93, %s94
    %p103 = scmp.eq.s32.totalorder %s15, 0
    %p104 = por %p102, %p103
    %p105 = scmp.ne.s32.totalorder %s93, %s94
    %p106 = scmp.eq.s32.totalorder %s16, 1
    %p107 = por %p105, %p106
    %p109 = scmp.ne.s32.totalorder %s94, %s108
    %p110 = scmp.eq.s32.totalorder %s16, 0
    %p111 = por %p109, %p110
    %s112 = ssub.s32 %s10, %s17
    %p113 = scmp.eq.s32.totalorder %s112, 0
    %s115 = sadd.s32 %s114, 1
    %s116 = scalar_select %p113, %s114, %s115
    %p119 = pneg %p113
    %p120 = scmp.eq.s32.totalorder %s10, 1
    %p121 = por %p119, %p120
    %p122 = scmp.ne.s32.totalorder %s114, %s117
    %p123 = scmp.eq.s32.totalorder %s10, 0
    %p124 = por %p122, %p123
    %p125 = scmp.ne.s32.totalorder %s114, %s117
    %p126 = scmp.eq.s32.totalorder %s15, 1
    %p127 = por %p125, %p126
    %p128 = scmp.ne.s32.totalorder %s117, %s118
    %p129 = scmp.eq.s32.totalorder %s15, 0
    %p130 = por %p128, %p129
    %p131 = scmp.ne.s32.totalorder %s117, %s118
    %p132 = scmp.eq.s32.totalorder %s16, 1
    %p133 = por %p131, %p132
    %p135 = scmp.ne.s32.totalorder %s118, %s134
    %p136 = scmp.eq.s32.totalorder %s16, 0
    %p137 = por %p135, %p136
    %p138 = scmp.le.s32.totalorder 1, %s10
    %p139 = scmp.lt.s32.totalorder %s10, 3
    %p140 = pnand %p138, %p139
    %p141 = pneg %p140
    // Predicated region
    $region9: #{downsample1d_forward.1} parent=5 // pred_check
      _
    $region10: #{downsample1d_forward.1} parent=5 // pred_check_branch
      %143 = sbr.rel (%p140) target = $region12
    $region11: #{downsample1d_forward.1} parent=5 // pred_region
      %s144 = ssub.s32 %s10, 1
      // Predicated region
      $region13: #{downsample1d_forward.1} parent=11 // pred_check
        %p145 = pneg %p83
      $region14: #{downsample1d_forward.1} parent=11 // pred_check_branch
        %147 = sbr.rel (%p145) target = $region16
      $region15: #{downsample1d_forward.1} parent=11 // pred_region
        _
      $region16: #{downsample1d_forward.1} parent=11 // pred_fallthru
        _
      // Predicated region
      $region17: #{downsample1d_forward.1} parent=11 // pred_check
        %p148 = pneg %p104
      $region18: #{downsample1d_forward.1} parent=11 // pred_check_branch
        %150 = sbr.rel (%p148) target = $region20
      $region19: #{downsample1d_forward.1} parent=11 // pred_region
        _
      $region20: #{downsample1d_forward.1} parent=11 // pred_fallthru
        _
    $region12: #{downsample1d_forward.1} parent=5 // pred_fallthru
      _
    %p151 = scmp.lt.s32.totalorder %s10, 2
    // Predicated region
    $region21: #{downsample1d_forward.1} parent=5 // pred_check
      %p152 = pneg %p151
    $region22: #{downsample1d_forward.1} parent=5 // pred_check_branch
      %154 = sbr.rel (%p152) target = $region24
    $region23: #{downsample1d_forward.1} parent=5 // pred_region
      // Predicated region
      $region25: #{downsample1d_forward.1} parent=23 // pred_check
        %p155 = pneg %p30
      $region26: #{downsample1d_forward.1} parent=23 // pred_check_branch
        %157 = sbr.rel (%p155) target = $region28
      $region27: #{downsample1d_forward.1} parent=23 // pred_region
        %p158 = scmp.lt.s32.totalorder %s10, 1
        %s159 = scalar_select %p158, %s10, 1
        %s160 = smul.addr %s159, 2
        %s161 = smul.addr %s160, 8
        %s162 = scalar_lea.vmem %s0, %s161
      $region28: #{downsample1d_forward.1} parent=23 // pred_fallthru
        _
      // Predicated region
      $region29: #{downsample1d_forward.1} parent=23 // pred_check
        %p163 = pneg %p56
      $region30: #{downsample1d_forward.1} parent=23 // pred_check_branch
        %165 = sbr.rel (%p163) target = $region32
      $region31: #{downsample1d_forward.1} parent=23 // pred_region
        %p166 = scmp.lt.s32.totalorder %s10, 1
        %s167 = scalar_select %p166, %s10, 1
        %s168 = smul.addr %s167, 8
        %s169 = scalar_lea.vmem %s1, %s168
      $region32: #{downsample1d_forward.1} parent=23 // pred_fallthru
        _
    $region24: #{downsample1d_forward.1} parent=5 // pred_fallthru
      _
    %p170 = scmp.le.s32.totalorder 1, %s10
    %p171 = scmp.lt.s32.totalorder %s10, 3
    %p172 = pnand %p170, %p171
    %p173 = pneg %p172
    // Predicated region
    $region33: #{downsample1d_forward.1} parent=5 // pred_check
      _
    $region34: #{downsample1d_forward.1} parent=5 // pred_check_branch
      %175 = sbr.rel (%p172) target = $region36
    $region35: #{downsample1d_forward.1} parent=5 // pred_region
      %s176 = ssub.s32 %s10, 1
      %p177 = scmp.lt.s32.totalorder %s15, 1
      %s178 = scalar_select %p177, %s15, 1
      %s179 = smul.addr %s178, 2
      %s180 = smul.addr %s179, 8
      %s181 = scalar_lea.vmem %s0, %s180
      %p182 = pneg %p36
      %p183 = pneg %p33
      %p184 = scmp.lt.s32.totalorder %s15, 1
      %s185 = scalar_select %p184, %s15, 1
      %s186 = smul.addr %s185, 8
      %s187 = scalar_lea.vmem %s1, %s186
      %p188 = pneg %p62
      %p189 = pneg %p59
      %p190 = pneg %p83
      %p191 = pneg %p80
      %p192 = pneg %p104
      %p193 = pneg %p101
      %p194 = pneg %p130
      %p195 = pneg %p127
      %p196 = scmp.lt.s32.totalorder %s15, 1
      %s197 = scalar_select %p196, %s15, 1
      %s198 = smul.addr %s197, 8
      %s199 = scalar_lea.vmem %s4, %s198
      %p200 = scmp.lt.s32.totalorder %s15, 1
      %s201 = scalar_select %p200, %s15, 1
      %s202 = smul.addr %s201, 2
      %s203 = smul.addr %s202, 8
      %s204 = scalar_lea.vmem %s0, %s203
      %p205 = scmp.lt.s32.totalorder %s15, 1
      %s206 = scalar_select %p205, %s15, 1
      %s207 = smul.addr %s206, 8
      %s208 = scalar_lea.vmem %s1, %s207
      %p209 = scmp.lt.s32.totalorder %s15, 1
      %s210 = scalar_select %p209, %s15, 1
      %s211 = smul.addr %s210, 8
      %s212 = scalar_lea.vmem %s4, %s211
      %v213 = vld [vmem:[%s204] sm:$0xff]
      %v214 = vld [vmem:[%s2] sm:$0xff]
      %v215 = vld [vmem:[%s208] sm:$0xff]
      %s216 = scalar_lea.vmem %s2, 8
      %v217 = vld [vmem:[%s216] sm:$0xff]
      %vm218 = vcmask 64512
      %v220 = vsel %vm218, %v215, 0
      %222 = vmatprep.subr.mxu0 0.0
      %223 = vmatpush1.msra.mxu0 0.0
      %224 = vmatprep.subr.mxu0 0.0
      %225 = vmatpush1.msra.mxu0 0.0
      %226 = vmatprep.subr.mxu0 0.0
      %227 = vmatpush1.msra.mxu0 0.0
      %228 = vmatprep.subr.mxu0 0.0
      %229 = vmatpush1.msra.mxu0 0.0
      %230 = vmatprep.subr.mxu0 0.0
      %231 = vmatpush1.msra.mxu0 0.0
      %232 = vmatprep.subr.mxu0 0.0
      %233 = vmatpush1.msra.mxu0 0.0
      %234 = vmatprep.subr.mxu0 0.0
      %235 = vmatpush1.msra.mxu0 0.0
      %236 = vmatprep.subr.mxu0 0.0
      %237 = vmatpush1.msra.mxu0 0.0
      %238 = vmatprep.subr.mxu0 0.0
      %239 = vmatpush1.msra.mxu0 0.0
      %240 = vmatprep.subr.mxu0 0.0
      %241 = vmatpush1.msra.mxu0 0.0
      %242 = vmatprep.subr.mxu0 0.0
      %243 = vmatpush1.msra.mxu0 0.0
      %244 = vmatprep.subr.mxu0 0.0
      %245 = vmatpush1.msra.mxu0 0.0
      %246 = vmatprep.subr.mxu0 0.0
      %247 = vmatpush1.msra.mxu0 0.0
      %248 = vmatprep.subr.mxu0 0.0
      %249 = vmatpush1.msra.mxu0 0.0
      %250 = vmatprep.subr.mxu0 0.0
      %251 = vmatpush1.msra.mxu0 0.0
      %252 = vmatprep.subr.mxu0 0.0
      %253 = vmatpush1.msra.mxu0 %v217
      %254 = vmatprep.subr.mxu0 0.0
      %255 = vmatpush2.msra.mxu0 0.0
      %256 = vmatprep.subr.mxu0 0.0
      %257 = vmatpush2.msra.mxu0 0.0
      %258 = vmatprep.subr.mxu0 0.0
      %259 = vmatpush2.msra.mxu0 0.0
      %260 = vmatprep.subr.mxu0 0.0
      %261 = vmatpush2.msra.mxu0 0.0
      %262 = vmatprep.subr.mxu0 0.0
      %263 = vmatpush2.msra.mxu0 0.0
      %264 = vmatprep.subr.mxu0 0.0
      %265 = vmatpush2.msra.mxu0 0.0
      %266 = vmatprep.subr.mxu0 0.0
      %267 = vmatpush2.msra.mxu0 0.0
      %268 = vmatprep.subr.mxu0 0.0
      %269 = vmatpush2.msra.mxu0 0.0
      %270 = vmatprep.subr.mxu0 0.0
      %271 = vmatpush2.msra.mxu0 0.0
      %272 = vmatprep.subr.mxu0 0.0
      %273 = vmatpush2.msra.mxu0 0.0
      %274 = vmatprep.subr.mxu0 0.0
      %275 = vmatpush2.msra.mxu0 0.0
      %276 = vmatprep.subr.mxu0 0.0
      %277 = vmatpush2.msra.mxu0 0.0
      %278 = vmatprep.subr.mxu0 0.0
      %279 = vmatpush2.msra.mxu0 0.0
      %280 = vmatprep.subr.mxu0 0.0
      %281 = vmatpush2.msra.mxu0 0.0
      %282 = vmatprep.subr.mxu0 0.0
      %283 = vmatpush2.msra.mxu0 0.0
      %284 = vmatprep.subr.mxu0 0.0
      %285 = vmatpush2.msra.mxu0 0.0
      %286 = vmatprep.mubr.f32.mxu0 0.0
      %287 = vmatmul.mubr.f32.gmra.mxu0 %v220
      %v288 = vpop.f32.mrf.mxu0
      %v289 = vadd.f32 0.0, %v288
      %v290 = vpop.f32.mrf.mxu0
      %291 = vdwg.mxu0
      %v293 = vsel %vm218, %v213, 0
      %295 = vmatprep.subr.mxu0 0.0
      %296 = vmatpush1.msra.mxu0 0.0
      %297 = vmatprep.subr.mxu0 0.0
      %298 = vmatpush1.msra.mxu0 0.0
      %299 = vmatprep.subr.mxu0 0.0
      %300 = vmatpush1.msra.mxu0 0.0
      %301 = vmatprep.subr.mxu0 0.0
      %302 = vmatpush1.msra.mxu0 0.0
      %303 = vmatprep.subr.mxu0 0.0
      %304 = vmatpush1.msra.mxu0 0.0
      %305 = vmatprep.subr.mxu0 0.0
      %306 = vmatpush1.msra.mxu0 0.0
      %307 = vmatprep.subr.mxu0 0.0
      %308 = vmatpush1.msra.mxu0 0.0
      %309 = vmatprep.subr.mxu0 0.0
      %310 = vmatpush1.msra.mxu0 0.0
      %311 = vmatprep.subr.mxu0 0.0
      %312 = vmatpush1.msra.mxu0 0.0
      %313 = vmatprep.subr.mxu0 0.0
      %314 = vmatpush1.msra.mxu0 0.0
      %315 = vmatprep.subr.mxu0 0.0
      %316 = vmatpush1.msra.mxu0 0.0
      %317 = vmatprep.subr.mxu0 0.0
      %318 = vmatpush1.msra.mxu0 0.0
      %319 = vmatprep.subr.mxu0 0.0
      %320 = vmatpush1.msra.mxu0 0.0
      %321 = vmatprep.subr.mxu0 0.0
      %322 = vmatpush1.msra.mxu0 0.0
      %323 = vmatprep.subr.mxu0 0.0
      %324 = vmatpush1.msra.mxu0 0.0
      %325 = vmatprep.subr.mxu0 0.0
      %326 = vmatpush1.msra.mxu0 %v214
      %327 = vmatprep.subr.mxu0 0.0
      %328 = vmatpush2.msra.mxu0 0.0
      %329 = vmatprep.subr.mxu0 0.0
      %330 = vmatpush2.msra.mxu0 0.0
      %331 = vmatprep.subr.mxu0 0.0
      %332 = vmatpush2.msra.mxu0 0.0
      %333 = vmatprep.subr.mxu0 0.0
      %334 = vmatpush2.msra.mxu0 0.0
      %335 = vmatprep.subr.mxu0 0.0
      %336 = vmatpush2.msra.mxu0 0.0
      %337 = vmatprep.subr.mxu0 0.0
      %338 = vmatpush2.msra.mxu0 0.0
      %339 = vmatprep.subr.mxu0 0.0
      %340 = vmatpush2.msra.mxu0 0.0
      %341 = vmatprep.subr.mxu0 0.0
      %342 = vmatpush2.msra.mxu0 0.0
      %343 = vmatprep.subr.mxu0 0.0
      %344 = vmatpush2.msra.mxu0 0.0
      %345 = vmatprep.subr.mxu0 0.0
      %346 = vmatpush2.msra.mxu0 0.0
      %347 = vmatprep.subr.mxu0 0.0
      %348 = vmatpush2.msra.mxu0 0.0
      %349 = vmatprep.subr.mxu0 0.0
      %350 = vmatpush2.msra.mxu0 0.0
      %351 = vmatprep.subr.mxu0 0.0
      %352 = vmatpush2.msra.mxu0 0.0
      %353 = vmatprep.subr.mxu0 0.0
      %354 = vmatpush2.msra.mxu0 0.0
      %355 = vmatprep.subr.mxu0 0.0
      %356 = vmatpush2.msra.mxu0 0.0
      %357 = vmatprep.subr.mxu0 0.0
      %358 = vmatpush2.msra.mxu0 0.0
      %359 = vmatprep.mubr.f32.mxu0 0.0
      %360 = vmatmul.mubr.f32.gmra.mxu0 %v293
      %v361 = vpop.f32.mrf.mxu0
      %v362 = vadd.f32 %v289, %v361
      %v363 = vpop.f32.mrf.mxu0
      %364 = vdwg.mxu0
      %v365 = vld [vmem:[%s204 + $0x1] sm:$0xff]
      %s366 = scalar_lea.vmem %s2, 16
      %v367 = vld [vmem:[%s366] sm:$0xff]
      %v369 = vsel %vm218, %v365, 0
      %371 = vmatprep.subr.mxu0 0.0
      %372 = vmatpush1.msra.mxu0 0.0
      %373 = vmatprep.subr.mxu0 0.0
      %374 = vmatpush1.msra.mxu0 0.0
      %375 = vmatprep.subr.mxu0 0.0
      %376 = vmatpush1.msra.mxu0 0.0
      %377 = vmatprep.subr.mxu0 0.0
      %378 = vmatpush1.msra.mxu0 0.0
      %379 = vmatprep.subr.mxu0 0.0
      %380 = vmatpush1.msra.mxu0 0.0
      %381 = vmatprep.subr.mxu0 0.0
      %382 = vmatpush1.msra.mxu0 0.0
      %383 = vmatprep.subr.mxu0 0.0
      %384 = vmatpush1.msra.mxu0 0.0
      %385 = vmatprep.subr.mxu0 0.0
      %386 = vmatpush1.msra.mxu0 0.0
      %387 = vmatprep.subr.mxu0 0.0
      %388 = vmatpush1.msra.mxu0 0.0
      %389 = vmatprep.subr.mxu0 0.0
      %390 = vmatpush1.msra.mxu0 0.0
      %391 = vmatprep.subr.mxu0 0.0
      %392 = vmatpush1.msra.mxu0 0.0
      %393 = vmatprep.subr.mxu0 0.0
      %394 = vmatpush1.msra.mxu0 0.0
      %395 = vmatprep.subr.mxu0 0.0
      %396 = vmatpush1.msra.mxu0 0.0
      %397 = vmatprep.subr.mxu0 0.0
      %398 = vmatpush1.msra.mxu0 0.0
      %399 = vmatprep.subr.mxu0 0.0
      %400 = vmatpush1.msra.mxu0 0.0
      %401 = vmatprep.subr.mxu0 0.0
      %402 = vmatpush1.msra.mxu0 %v367
      %403 = vmatprep.subr.mxu0 0.0
      %404 = vmatpush2.msra.mxu0 0.0
      %405 = vmatprep.subr.mxu0 0.0
      %406 = vmatpush2.msra.mxu0 0.0
      %407 = vmatprep.subr.mxu0 0.0
      %408 = vmatpush2.msra.mxu0 0.0
      %409 = vmatprep.subr.mxu0 0.0
      %410 = vmatpush2.msra.mxu0 0.0
      %411 = vmatprep.subr.mxu0 0.0
      %412 = vmatpush2.msra.mxu0 0.0
      %413 = vmatprep.subr.mxu0 0.0
      %414 = vmatpush2.msra.mxu0 0.0
      %415 = vmatprep.subr.mxu0 0.0
      %416 = vmatpush2.msra.mxu0 0.0
      %417 = vmatprep.subr.mxu0 0.0
      %418 = vmatpush2.msra.mxu0 0.0
      %419 = vmatprep.subr.mxu0 0.0
      %420 = vmatpush2.msra.mxu0 0.0
      %421 = vmatprep.subr.mxu0 0.0
      %422 = vmatpush2.msra.mxu0 0.0
      %423 = vmatprep.subr.mxu0 0.0
      %424 = vmatpush2.msra.mxu0 0.0
      %425 = vmatprep.subr.mxu0 0.0
      %426 = vmatpush2.msra.mxu0 0.0
      %427 = vmatprep.subr.mxu0 0.0
      %428 = vmatpush2.msra.mxu0 0.0
      %429 = vmatprep.subr.mxu0 0.0
      %430 = vmatpush2.msra.mxu0 0.0
      %431 = vmatprep.subr.mxu0 0.0
      %432 = vmatpush2.msra.mxu0 0.0
      %433 = vmatprep.subr.mxu0 0.0
      %434 = vmatpush2.msra.mxu0 0.0
      %435 = vmatprep.mubr.f32.mxu0 0.0
      %436 = vmatmul.mubr.f32.gmra.mxu0 %v369
      %v437 = vpop.f32.mrf.mxu0
      %v438 = vadd.f32 0.0, %v437
      %v439 = vpop.f32.mrf.mxu0
      %440 = vdwg.mxu0
      %v441 = vadd.f32 %v362, %v438
      %v442 = vld [vmem:[%s3] sm:$0x1]
      %v444 = vlaneseq
      %v445 = vshrl.u32 %v444, 7
      %v446 = vsub.s32 0, %v445
      %v447 = vrot.slane %v442, %v446
      %v449 = vadd.f32 %v441, %v447
      %450 = vst.msk [vmem:[%s212] sm:$0xff] %vm218, %v449
      %p451 = scmp.lt.s32.totalorder %s15, 1
      %s452 = scalar_select %p451, %s15, 1
      %s453 = smul.addr %s452, 8
      %s454 = scalar_lea.vmem %s4, %s453
      // Predicated region
      $region37: #{downsample1d_forward.1} parent=35 // pred_check
        %p455 = pneg %p127
      $region38: #{downsample1d_forward.1} parent=35 // pred_check_branch
        %457 = sbr.rel (%p455) target = $region40
      $region39: #{downsample1d_forward.1} parent=35 // pred_region
        _
      $region40: #{downsample1d_forward.1} parent=35 // pred_fallthru
        _
    $region36: #{downsample1d_forward.1} parent=5 // pred_fallthru
      _
    %p458 = scmp.le.s32.totalorder 2, %s10
    // Predicated region
    $region41: #{downsample1d_forward.1} parent=5 // pred_check
      %p459 = pneg %p458
    $region42: #{downsample1d_forward.1} parent=5 // pred_check_branch
      %461 = sbr.rel (%p459) target = $region44
    $region43: #{downsample1d_forward.1} parent=5 // pred_region
      %s462 = ssub.s32 %s10, 2
      // Predicated region
      $region45: #{downsample1d_forward.1} parent=43 // pred_check
        %p463 = pneg %p133
      $region46: #{downsample1d_forward.1} parent=43 // pred_check_branch
        %465 = sbr.rel (%p463) target = $region48
      $region47: #{downsample1d_forward.1} parent=43 // pred_region
        %p466 = scmp.lt.s32.totalorder %s16, 1
        %s467 = scalar_select %p466, %s16, 1
        %s468 = smul.addr %s467, 8
        %s469 = scalar_lea.vmem %s4, %s468
      $region48: #{downsample1d_forward.1} parent=43 // pred_fallthru
        _
    $region44: #{downsample1d_forward.1} parent=5 // pred_fallthru
      _
  $region6: #{downsample1d_forward.1} parent=0 // loop_footer
    %s14 = sadd.s32 1, %s10
  $region7: #{downsample1d_forward.1} parent=0 // loop_footer_branch
    %9 = sbr.rel target = $region3
  $region8: #{downsample1d_forward.1} parent=0 // loop_exit
    _

</llo_original>
